<compile_context>
chip_gen: v6e
topology: v6e:2x2x1
jax: 0.10.0
libtpu: 0.0.40
codegen_flags: <defaults>
</compile_context>

<pallas_src>
import functools

import jax
import jax.numpy as jnp
from jax.experimental import pallas as pl
from jax.experimental.pallas import tpu as pltpu


def _conv_bn_relu_kernel(p_ref, w_ref, shift_ref, o_ref):
    """Whole-batch fused conv (im2col matmul) + folded BN + ReLU.

    p_ref:     (N, K, OHW)    im2col patches, lane-dense (OH*OW on lanes)
    w_ref:     (Cout, K)      conv weight with BN scale folded in
    shift_ref: (Cout, 1)      fused conv-bias + BN shift
    o_ref:     (N, Cout, OHW) output tile (maps directly to NCHW)
    """
    n = p_ref.shape[0]
    shift = shift_ref[...]                      # (Cout, 1), hoisted out of loop
    for b in range(n):                          # static unroll over tiny batch
        acc = jnp.dot(w_ref[...], p_ref[b],     # (Cout, K) @ (K, OHW) on the MXU
                      preferred_element_type=jnp.float32)
        o_ref[b] = jnp.maximum(acc + shift, 0.0).astype(o_ref.dtype)


def conv2d_bn_relu(x_nchw, w_oihw, bias, gamma, beta, running_mean,
                   running_var, *, padding=1, eps=1e-5):
    """Conv2d(stride=1, dilation=1) + BatchNorm2d (inference) + ReLU, NCHW."""
    n, cin, h, w = x_nchw.shape
    cout, cin_w, kh, kw = w_oihw.shape
    assert cin == cin_w
    hp, wp = h + 2 * padding, w + 2 * padding
    oh, ow = hp - kh + 1, wp - kw + 1           # stride=1, dilation=1
    k = cin * kh * kw
    ohw = oh * ow

    # --- wrapper-side glue (XLA): pad + im2col, BN folding -----------------
    x_pad = jnp.pad(
        x_nchw, ((0, 0), (0, 0), (padding, padding), (padding, padding)))
    # Tap ordering (cin, kh, kw) matches w_oihw.reshape(Cout, Cin*KH*KW).
    taps = [x_pad[:, :, i:i + oh, j:j + ow]     # each (N, Cin, OH, OW)
            for i in range(kh) for j in range(kw)]
    patches = jnp.stack(taps, axis=2)           # (N, Cin, KH*KW, OH, OW)
    patches = patches.reshape(n, k, ohw).astype(jnp.float32)

    inv_std = jax.lax.rsqrt(running_var.astype(jnp.float32) + eps)
    scale = gamma.astype(jnp.float32) * inv_std                       # (Cout,)
    w_folded = w_oihw.reshape(cout, k).astype(jnp.float32) * scale[:, None]
    shift = (scale * (bias.astype(jnp.float32)
                      - running_mean.astype(jnp.float32))
             + beta.astype(jnp.float32)).reshape(cout, 1)

    flops = 2 * n * cout * k * ohw
    bytes_accessed = 4 * (n * k * ohw + cout * k + cout + n * cout * ohw)
    cost = pl.CostEstimate(flops=flops, transcendentals=0,
                           bytes_accessed=bytes_accessed)

    out_flat = pl.pallas_call(
        _conv_bn_relu_kernel,
        out_shape=jax.ShapeDtypeStruct((n, cout, ohw), x_nchw.dtype),
        grid_spec=pltpu.PrefetchScalarGridSpec(
            num_scalar_prefetch=0,
            grid=(1,),                                   # single step, whole batch
            in_specs=[
                pl.BlockSpec((n, k, ohw), lambda i: (0, 0, 0)),
                pl.BlockSpec((cout, k), lambda i: (0, 0)),
                pl.BlockSpec((cout, 1), lambda i: (0, 0)),
            ],
            out_specs=pl.BlockSpec((n, cout, ohw), lambda i: (0, 0, 0)),
        ),
        compiler_params=pltpu.CompilerParams(
            dimension_semantics=("arbitrary",)),
        cost_estimate=cost,
    )(patches, w_folded, shift)

    # (N, Cout, OH*OW) -> NCHW (pure reshape; no transpose needed)
    return out_flat.reshape(n, cout, oh, ow)


def _reference(x_nchw, w_oihw, bias, gamma, beta, mean, var, padding=1, eps=1e-5):
    conv = jax.lax.conv_general_dilated(
        x_nchw, w_oihw, window_strides=(1, 1),
        padding=((padding, padding), (padding, padding)),
        dimension_numbers=('NCHW', 'OIHW', 'NCHW'))
    conv = conv + bias[None, :, None, None]
    bn = gamma[None, :, None, None] * (conv - mean[None, :, None, None]) \
        / jnp.sqrt(var + eps)[None, :, None, None] + beta[None, :, None, None]
    return jnp.maximum(bn, 0.0)


if __name__ == "__main__":
    key = jax.random.PRNGKey(0)
    k_x, k_w, k_b = jax.random.split(key, 3)

    N, Cin, H, W = 2, 4, 16, 16
    Cout, K = 8, 3

    x = jax.random.normal(k_x, (N, Cin, H, W), dtype=jnp.float32)
    weight = jax.random.normal(k_w, (Cout, Cin, K, K), dtype=jnp.float32) * 0.1
    bias = jax.random.normal(k_b, (Cout,), dtype=jnp.float32) * 0.1

    # Deterministic (non-trivial) BatchNorm parameters / running stats.
    gamma = 1.0 + 0.02 * jnp.arange(Cout, dtype=jnp.float32)
    beta = 0.01 * jnp.arange(Cout, dtype=jnp.float32)
    running_mean = 0.1 * jnp.arange(Cout, dtype=jnp.float32)
    running_var = 1.0 + 0.05 * jnp.arange(Cout, dtype=jnp.float32)

    fn = jax.jit(functools.partial(conv2d_bn_relu, padding=1))
    out = fn(x, weight, bias, gamma, beta, running_mean, running_var)
    out = jax.block_until_ready(out)

    ref = _reference(x, weight, bias, gamma, beta, running_mean, running_var)
    assert out.shape == (N, Cout, H, W), out.shape
    assert jnp.allclose(out, ref, atol=1e-4, rtol=1e-4), \
        f"max abs err = {jnp.max(jnp.abs(out - ref))}"

    print("KERNEL_OK")
</pallas_src>

<mosaic_0001>
module attributes {stable_mosaic.version = 11 : i64} {
  func.func @_conv_bn_relu_kernel(%arg0: i32, %arg1: memref<2x36x256xf32, #tpu.memory_space<vmem>>, %arg2: memref<8x36xf32, #tpu.memory_space<vmem>>, %arg3: memref<8x1xf32, #tpu.memory_space<vmem>>, %arg4: memref<2x8x256xf32, #tpu.memory_space<vmem>>) attributes {dimension_semantics = [#tpu.dimension_semantics<arbitrary>], iteration_bounds = array<i64: 1>, scalar_prefetch = 0 : i64, scratch_operands = 0 : i64, tpu.core_type = #tpu.core_type<tc>, window_params = [{pipeline_mode = #tpu.pipeline_mode<synchronous>, transform_indices = @transform_0, window_bounds = array<i64: 2, 36, 256>}, {pipeline_mode = #tpu.pipeline_mode<synchronous>, transform_indices = @transform_1, window_bounds = array<i64: 8, 36>}, {pipeline_mode = #tpu.pipeline_mode<synchronous>, transform_indices = @transform_2, window_bounds = array<i64: 8, 1>}, {pipeline_mode = #tpu.pipeline_mode<synchronous>, transform_indices = @transform_3, window_bounds = array<i64: 2, 8, 256>}]} {
    %c0 = arith.constant 0 : index
    %c0_0 = arith.constant 0 : index
    %0 = vector.load %arg3[%c0, %c0_0] : memref<8x1xf32, #tpu.memory_space<vmem>>, vector<8x1xf32>
    %c0_1 = arith.constant 0 : index
    %c0_2 = arith.constant 0 : index
    %1 = vector.load %arg2[%c0_1, %c0_2] : memref<8x36xf32, #tpu.memory_space<vmem>>, vector<8x36xf32>
    %c0_3 = arith.constant 0 : index
    %c0_4 = arith.constant 0 : index
    %c0_5 = arith.constant 0 : index
    %2 = vector.load %arg1[%c0_3, %c0_4, %c0_5] : memref<2x36x256xf32, #tpu.memory_space<vmem>>, vector<1x36x256xf32>
    %3 = vector.shape_cast %2 : vector<1x36x256xf32> to vector<36x256xf32>
    %cst = arith.constant dense<0.000000e+00> : vector<8x256xf32>
    %4 = tpu.matmul %1, %3, %cst {dimension_numbers = #tpu.dot_dimension_numbers<[1], [0], [0], [1], [0, 0, 1, 1], [], []>} : vector<8x36xf32>, vector<36x256xf32>, vector<8x256xf32> -> vector<8x256xf32>
    %5 = vector.broadcast %0 : vector<8x1xf32> to vector<8x256xf32>
    %6 = arith.addf %4, %5 : vector<8x256xf32>
    %cst_6 = arith.constant 0.000000e+00 : f32
    %7 = vector.broadcast %cst_6 : f32 to vector<8x256xf32>
    %8 = arith.maximumf %6, %7 : vector<8x256xf32>
    %c0_7 = arith.constant 0 : index
    %c0_8 = arith.constant 0 : index
    %c0_9 = arith.constant 0 : index
    %9 = vector.load %arg4[%c0_7, %c0_8, %c0_9] : memref<2x8x256xf32, #tpu.memory_space<vmem>>, vector<1x8x256xf32>
    %10 = vector.shape_cast %9 : vector<1x8x256xf32> to vector<8x256xf32>
    %11 = vector.shape_cast %8 : vector<8x256xf32> to vector<1x8x256xf32>
    tpu.vector_store %arg4[%c0_7, %c0_8, %c0_9], %11 {strides = array<i32>} : memref<2x8x256xf32, #tpu.memory_space<vmem>>, vector<1x8x256xf32>,
    %c0_10 = arith.constant 0 : index
    %c0_11 = arith.constant 0 : index
    %12 = vector.load %arg2[%c0_10, %c0_11] : memref<8x36xf32, #tpu.memory_space<vmem>>, vector<8x36xf32>
    %c1 = arith.constant 1 : index
    %c0_12 = arith.constant 0 : index
    %c0_13 = arith.constant 0 : index
    %13 = vector.load %arg1[%c1, %c0_12, %c0_13] : memref<2x36x256xf32, #tpu.memory_space<vmem>>, vector<1x36x256xf32>
    %14 = vector.shape_cast %13 : vector<1x36x256xf32> to vector<36x256xf32>
    %cst_14 = arith.constant dense<0.000000e+00> : vector<8x256xf32>
    %15 = tpu.matmul %12, %14, %cst_14 {dimension_numbers = #tpu.dot_dimension_numbers<[1], [0], [0], [1], [0, 0, 1, 1], [], []>} : vector<8x36xf32>, vector<36x256xf32>, vector<8x256xf32> -> vector<8x256xf32>
    %16 = vector.broadcast %0 : vector<8x1xf32> to vector<8x256xf32>
    %17 = arith.addf %15, %16 : vector<8x256xf32>
    %cst_15 = arith.constant 0.000000e+00 : f32
    %18 = vector.broadcast %cst_15 : f32 to vector<8x256xf32>
    %19 = arith.maximumf %17, %18 : vector<8x256xf32>
    %c1_16 = arith.constant 1 : index
    %c0_17 = arith.constant 0 : index
    %c0_18 = arith.constant 0 : index
    %20 = vector.load %arg4[%c1_16, %c0_17, %c0_18] : memref<2x8x256xf32, #tpu.memory_space<vmem>>, vector<1x8x256xf32>
    %21 = vector.shape_cast %20 : vector<1x8x256xf32> to vector<8x256xf32>
    %22 = vector.shape_cast %19 : vector<8x256xf32> to vector<1x8x256xf32>
    tpu.vector_store %arg4[%c1_16, %c0_17, %c0_18], %22 {strides = array<i32>} : memref<2x8x256xf32, #tpu.memory_space<vmem>>, vector<1x8x256xf32>,
    return
  }
  func.func @transform_0(%arg0: i32) -> (i32, i32, i32) {
    %c0_i32 = arith.constant 0 : i32
    %c0_i32_0 = arith.constant 0 : i32
    %c0_i32_1 = arith.constant 0 : i32
    %c0_i32_2 = arith.constant 0 : i32
    return %c0_i32, %c0_i32_0, %c0_i32_1 : i32, i32, i32
  }
  func.func @transform_1(%arg0: i32) -> (i32, i32) {
    %c0_i32 = arith.constant 0 : i32
    %c0_i32_0 = arith.constant 0 : i32
    %c0_i32_1 = arith.constant 0 : i32
    return %c0_i32, %c0_i32_0 : i32, i32
  }
  func.func @transform_2(%arg0: i32) -> (i32, i32) {
    %c0_i32 = arith.constant 0 : i32
    %c0_i32_0 = arith.constant 0 : i32
    %c0_i32_1 = arith.constant 0 : i32
    return %c0_i32, %c0_i32_0 : i32, i32
  }
  func.func @transform_3(%arg0: i32) -> (i32, i32, i32) {
    %c0_i32 = arith.constant 0 : i32
    %c0_i32_0 = arith.constant 0 : i32
    %c0_i32_1 = arith.constant 0 : i32
    %c0_i32_2 = arith.constant 0 : i32
    return %c0_i32, %c0_i32_0, %c0_i32_1 : i32, i32, i32
  }
}

</mosaic_0001>

<llo_original>
// kernel: conv2d_bn_relu.1
$region0: #{conv2d_bn_relu.1}
  #allocation0 [shape = 'u32[]', space=smem, size = 0x4, offset = 0x4, fixed_abs, tag = 'smem constant byte address 0x4 - core index']
  #allocation1 [shape = 'u32[144,128]{1,0:T(1,128)}', space=vmem, size = 0x12000, scoped, tag = 'internal scratch']
  %s0 = inlined_call_operand.vmem [shape: f32[2,36,256], index: 0, kind: input, shape index: {}]
  %s1 = inlined_call_operand.vmem [shape: f32[8,36], index: 1, kind: input, shape index: {}]
  %s2 = inlined_call_operand.vmem [shape: f32[8,1], index: 2, kind: input, shape index: {}]
  %s3 = inlined_call_operand.vmem [shape: f32[2,8,256], index: 3, kind: output, shape index: {}]
  %s4 = sld [smem:[#allocation0]]
  $region22: #{conv2d_bn_relu.1} parent=0
    _
  %s6 = ssub.s32 1, %s4
  %s7 = scalar_select 0, %s6, %s4
  // Predicated region
  $region2: #{conv2d_bn_relu.1} parent=0 // pred_check
    _
  $region3: #{conv2d_bn_relu.1} parent=0 // pred_check_branch
    %9 = sbr.rel (0) target = $region5
  $region4: #{conv2d_bn_relu.1} parent=0 // pred_region
    _
  $region5: #{conv2d_bn_relu.1} parent=0 // pred_fallthru
    _
  // Predicated region
  $region6: #{conv2d_bn_relu.1} parent=0 // pred_check
    _
  $region7: #{conv2d_bn_relu.1} parent=0 // pred_check_branch
    %11 = sbr.rel (0) target = $region9
  $region8: #{conv2d_bn_relu.1} parent=0 // pred_region
    _
  $region9: #{conv2d_bn_relu.1} parent=0 // pred_fallthru
    _
  // Predicated region
  $region10: #{conv2d_bn_relu.1} parent=0 // pred_check
    _
  $region11: #{conv2d_bn_relu.1} parent=0 // pred_check_branch
    %13 = sbr.rel (0) target = $region13
  $region12: #{conv2d_bn_relu.1} parent=0 // pred_region
    _
  $region13: #{conv2d_bn_relu.1} parent=0 // pred_fallthru
    _
  %v14 = vld [vmem:[%s2] sm:$0xff]
  %v15 = vld [vmem:[%s1] sm:$0xff]
  %v16 = vld [vmem:[%s0] sm:$0xff]
  %v17 = vld [vmem:[%s0 + $0x8] sm:$0xff]
  %v18 = vld [vmem:[%s0 + $0x10] sm:$0xff]
  %v19 = vld [vmem:[%s0 + $0x18] sm:$0xff]
  %v20 = vld [vmem:[%s0 + $0x20] sm:$0xff]
  %v21 = vld [vmem:[%s0 + $0x28] sm:$0xff]
  %v22 = vld [vmem:[%s0 + $0x30] sm:$0xff]
  %v23 = vld [vmem:[%s0 + $0x38] sm:$0xff]
  %v24 = vld [vmem:[%s0 + $0x40] sm:$0xf]
  %v25 = vld [vmem:[%s0 + $0x48] sm:$0xf]
  %27 = vset.pattern.permute.xlu0 0
  %28 = vperm.xlu0 %27, %v14
  %v29 = vpop.permute.xlu0 %28
  %vm31 = vcmask 293888
  %v33 = vsel %vm31, %v15, 0
  %vm35 = vcmask 1043456
  %v37 = vsel %vm35, %v24, 0
  %v40 = vsel %vm35, %v25, 0
  %42 = vmatprep.subr.mxu0 0.0
  %43 = vmatpush1.msra.mxu0 0.0
  %44 = vmatprep.subr.mxu0 0.0
  %45 = vmatpush1.msra.mxu0 0.0
  %46 = vmatprep.subr.mxu0 0.0
  %47 = vmatpush1.msra.mxu0 0.0
  %48 = vmatprep.subr.mxu0 0.0
  %49 = vmatpush1.msra.mxu0 0.0
  %50 = vmatprep.subr.mxu0 0.0
  %51 = vmatpush1.msra.mxu0 0.0
  %52 = vmatprep.subr.mxu0 0.0
  %53 = vmatpush1.msra.mxu0 0.0
  %54 = vmatprep.subr.mxu0 0.0
  %55 = vmatpush1.msra.mxu0 0.0
  %56 = vmatprep.subr.mxu0 0.0
  %57 = vmatpush1.msra.mxu0 0.0
  %58 = vmatprep.subr.mxu0 0.0
  %59 = vmatpush1.msra.mxu0 0.0
  %60 = vmatprep.subr.mxu0 0.0
  %61 = vmatpush1.msra.mxu0 0.0
  %62 = vmatprep.subr.mxu0 0.0
  %63 = vmatpush1.msra.mxu0 0.0
  %64 = vmatprep.subr.mxu0 %v40
  %65 = vmatpush1.msra.mxu0 %v37
  %66 = vmatprep.subr.mxu0 %v23
  %67 = vmatpush1.msra.mxu0 %v22
  %68 = vmatprep.subr.mxu0 %v21
  %69 = vmatpush1.msra.mxu0 %v20
  %70 = vmatprep.subr.mxu0 %v19
  %71 = vmatpush1.msra.mxu0 %v18
  %72 = vmatprep.subr.mxu0 %v17
  %73 = vmatpush1.msra.mxu0 %v16
  %74 = vmatprep.subr.mxu0 0.0
  %75 = vmatpush2.msra.mxu0 0.0
  %76 = vmatprep.subr.mxu0 0.0
  %77 = vmatpush2.msra.mxu0 0.0
  %78 = vmatprep.subr.mxu0 0.0
  %79 = vmatpush2.msra.mxu0 0.0
  %80 = vmatprep.subr.mxu0 0.0
  %81 = vmatpush2.msra.mxu0 0.0
  %82 = vmatprep.subr.mxu0 0.0
  %83 = vmatpush2.msra.mxu0 0.0
  %84 = vmatprep.subr.mxu0 0.0
  %85 = vmatpush2.msra.mxu0 0.0
  %86 = vmatprep.subr.mxu0 0.0
  %87 = vmatpush2.msra.mxu0 0.0
  %88 = vmatprep.subr.mxu0 0.0
  %89 = vmatpush2.msra.mxu0 0.0
  %90 = vmatprep.subr.mxu0 0.0
  %91 = vmatpush2.msra.mxu0 0.0
  %92 = vmatprep.subr.mxu0 0.0
  %93 = vmatpush2.msra.mxu0 0.0
  %94 = vmatprep.subr.mxu0 0.0
  %95 = vmatpush2.msra.mxu0 0.0
  %96 = vmatprep.subr.mxu0 0.0
  %97 = vmatpush2.msra.mxu0 0.0
  %98 = vmatprep.subr.mxu0 0.0
  %99 = vmatpush2.msra.mxu0 0.0
  %100 = vmatprep.subr.mxu0 0.0
  %101 = vmatpush2.msra.mxu0 0.0
  %102 = vmatprep.subr.mxu0 0.0
  %103 = vmatpush2.msra.mxu0 0.0
  %104 = vmatprep.subr.mxu0 0.0
  %105 = vmatpush2.msra.mxu0 0.0
  %106 = vmatprep.mubr.f32.mxu0 0.0
  %107 = vmatmul.mubr.f32.gmra.mxu0 %v33
  %v108 = vpop.f32.mrf.mxu0
  %v109 = vadd.f32 %v29, %v108
  %v110 = vpop.f32.mrf.mxu0
  %v111 = vadd.f32 %v29, %v110
  %112 = vdwg.mxu0
  %v113 = vmax.f32 %v109, 0.0
  %v114 = vmax.f32 %v111, 0.0
  %115 = vst [vmem:[%s3] sm:$0xff] %v113
  %116 = vst [vmem:[%s3 + $0x8] sm:$0xff] %v114
  %v117 = vld [vmem:[%s1] sm:$0xff]
  %s118 = scalar_lea.vmem %s0, 80
  %v119 = vld [vmem:[%s118] sm:$0xff]
  %v120 = vld [vmem:[%s118 + $0x8] sm:$0xff]
  %v121 = vld [vmem:[%s118 + $0x10] sm:$0xff]
  %v122 = vld [vmem:[%s118 + $0x18] sm:$0xff]
  %v123 = vld [vmem:[%s118 + $0x20] sm:$0xff]
  %v124 = vld [vmem:[%s118 + $0x28] sm:$0xff]
  %v125 = vld [vmem:[%s118 + $0x30] sm:$0xff]
  %v126 = vld [vmem:[%s118 + $0x38] sm:$0xff]
  %v127 = vld [vmem:[%s118 + $0x40] sm:$0xf]
  %v128 = vld [vmem:[%s118 + $0x48] sm:$0xf]
  %v130 = vsel %vm31, %v117, 0
  %v133 = vsel %vm35, %v127, 0
  %v136 = vsel %vm35, %v128, 0
  %138 = vmatprep.subr.mxu0 0.0
  %139 = vmatpush1.msra.mxu0 0.0
  %140 = vmatprep.subr.mxu0 0.0
  %141 = vmatpush1.msra.mxu0 0.0
  %142 = vmatprep.subr.mxu0 0.0
  %143 = vmatpush1.msra.mxu0 0.0
  %144 = vmatprep.subr.mxu0 0.0
  %145 = vmatpush1.msra.mxu0 0.0
  %146 = vmatprep.subr.mxu0 0.0
  %147 = vmatpush1.msra.mxu0 0.0
  %148 = vmatprep.subr.mxu0 0.0
  %149 = vmatpush1.msra.mxu0 0.0
  %150 = vmatprep.subr.mxu0 0.0
  %151 = vmatpush1.msra.mxu0 0.0
  %152 = vmatprep.subr.mxu0 0.0
  %153 = vmatpush1.msra.mxu0 0.0
  %154 = vmatprep.subr.mxu0 0.0
  %155 = vmatpush1.msra.mxu0 0.0
  %156 = vmatprep.subr.mxu0 0.0
  %157 = vmatpush1.msra.mxu0 0.0
  %158 = vmatprep.subr.mxu0 0.0
  %159 = vmatpush1.msra.mxu0 0.0
  %160 = vmatprep.subr.mxu0 %v136
  %161 = vmatpush1.msra.mxu0 %v133
  %162 = vmatprep.subr.mxu0 %v126
  %163 = vmatpush1.msra.mxu0 %v125
  %164 = vmatprep.subr.mxu0 %v124
  %165 = vmatpush1.msra.mxu0 %v123
  %166 = vmatprep.subr.mxu0 %v122
  %167 = vmatpush1.msra.mxu0 %v121
  %168 = vmatprep.subr.mxu0 %v120
  %169 = vmatpush1.msra.mxu0 %v119
  %170 = vmatprep.subr.mxu0 0.0
  %171 = vmatpush2.msra.mxu0 0.0
  %172 = vmatprep.subr.mxu0 0.0
  %173 = vmatpush2.msra.mxu0 0.0
  %174 = vmatprep.subr.mxu0 0.0
  %175 = vmatpush2.msra.mxu0 0.0
  %176 = vmatprep.subr.mxu0 0.0
  %177 = vmatpush2.msra.mxu0 0.0
  %178 = vmatprep.subr.mxu0 0.0
  %179 = vmatpush2.msra.mxu0 0.0
  %180 = vmatprep.subr.mxu0 0.0
  %181 = vmatpush2.msra.mxu0 0.0
  %182 = vmatprep.subr.mxu0 0.0
  %183 = vmatpush2.msra.mxu0 0.0
  %184 = vmatprep.subr.mxu0 0.0
  %185 = vmatpush2.msra.mxu0 0.0
  %186 = vmatprep.subr.mxu0 0.0
  %187 = vmatpush2.msra.mxu0 0.0
  %188 = vmatprep.subr.mxu0 0.0
  %189 = vmatpush2.msra.mxu0 0.0
  %190 = vmatprep.subr.mxu0 0.0
  %191 = vmatpush2.msra.mxu0 0.0
  %192 = vmatprep.subr.mxu0 0.0
  %193 = vmatpush2.msra.mxu0 0.0
  %194 = vmatprep.subr.mxu0 0.0
  %195 = vmatpush2.msra.mxu0 0.0
  %196 = vmatprep.subr.mxu0 0.0
  %197 = vmatpush2.msra.mxu0 0.0
  %198 = vmatprep.subr.mxu0 0.0
  %199 = vmatpush2.msra.mxu0 0.0
  %200 = vmatprep.subr.mxu0 0.0
  %201 = vmatpush2.msra.mxu0 0.0
  %202 = vmatprep.mubr.f32.mxu0 0.0
  %203 = vmatmul.mubr.f32.gmra.mxu0 %v130
  %v204 = vpop.f32.mrf.mxu0
  %v205 = vadd.f32 %v29, %v204
  %v206 = vpop.f32.mrf.mxu0
  %v207 = vadd.f32 %v29, %v206
  %208 = vdwg.mxu0
  %v209 = vmax.f32 %v205, 0.0
  %v210 = vmax.f32 %v207, 0.0
  %s211 = scalar_lea.vmem %s3, 16
  %212 = vst [vmem:[%s211] sm:$0xff] %v209
  %213 = vst [vmem:[%s211 + $0x8] sm:$0xff] %v210
  // Predicated region
  $region14: #{conv2d_bn_relu.1} parent=0 // pred_check
    _
  $region15: #{conv2d_bn_relu.1} parent=0 // pred_check_branch
    %215 = sbr.rel (0) target = $region17
  $region16: #{conv2d_bn_relu.1} parent=0 // pred_region
    _
  $region17: #{conv2d_bn_relu.1} parent=0 // pred_fallthru
    _
  // Predicated region
  $region18: #{conv2d_bn_relu.1} parent=0 // pred_check
    _
  $region19: #{conv2d_bn_relu.1} parent=0 // pred_check_branch
    %217 = sbr.rel (0) target = $region21
  $region20: #{conv2d_bn_relu.1} parent=0 // pred_region
    _
  $region21: #{conv2d_bn_relu.1} parent=0 // pred_fallthru
    _

</llo_original>
